<compile_context>
chip_gen: v7x
topology: tpu7x:2x2x1
jax: 0.10.0
libtpu: 0.0.40
codegen_flags: <defaults>
</compile_context>

<pallas_src>
import jax
import jax.numpy as jnp
from jax.experimental import pallas as pl
from jax.experimental.pallas import tpu as pltpu

_LANE = 128
_VMEM_LIMIT_BYTES = 32 * 1024 * 1024      # requested scoped VMEM (safe all gens)
_PER_BUFFER_BUDGET = 8 * 1024 * 1024      # per input buffer (x2 double buffering)


def _max_last_kernel(x_ref, o_ref):
    # x_ref: (block_rows, W) tile in VMEM ; o_ref: (block_rows, 1)
    # TODO(synk): for very small W a lane-dense (1, block_rows) output layout
    # (sublane->lane relayout of per-row maxima) would avoid masked stores.
    o_ref[...] = jnp.max(x_ref[...], axis=-1, keepdims=True)


def _auto_block_rows(rows, w, itemsize):
    """Largest row tile whose double-buffered input stays under budget."""
    padded_w = pl.cdiv(w, _LANE) * _LANE          # VMEM lane padding of narrow W
    per_row_bytes = padded_w * itemsize
    bm = max(_PER_BUFFER_BUDGET // per_row_bytes, 16)
    bm = max((bm // 16) * 16, 16)                 # multiple of 16 (bf16 sublanes)
    if rows <= bm:
        return rows                               # single block covers everything
    return int(bm)


def _max_lastdim_2d(x2, block_rows=None):
    rows, w = x2.shape
    if block_rows is None:
        block_rows = _auto_block_rows(rows, w, jnp.dtype(x2.dtype).itemsize)
    block_rows = int(min(block_rows, rows))
    grid = (pl.cdiv(rows, block_rows),)

    return pl.pallas_call(
        _max_last_kernel,
        out_shape=jax.ShapeDtypeStruct((rows, 1), x2.dtype),
        grid_spec=pltpu.PrefetchScalarGridSpec(
            num_scalar_prefetch=0,
            grid=grid,
            in_specs=[pl.BlockSpec((block_rows, w), lambda i: (i, 0))],
            out_specs=pl.BlockSpec((block_rows, 1), lambda i: (i, 0)),
        ),
        compiler_params=pltpu.CompilerParams(
            dimension_semantics=("parallel",),
            vmem_limit_bytes=_VMEM_LIMIT_BYTES,
        ),
    )(x2)


def max_layer(x, dim=-1, *, block_rows=None):
    """Pallas implementation of MaxLayer: max over `dim` with keepdim=True."""
    ndim = x.ndim
    ax = dim % ndim
    if ax != ndim - 1:
        # General dim: move the reduction axis last (one XLA transpose), reduce,
        # then move the kept size-1 axis back.
        xt = jnp.moveaxis(x, ax, -1)
        out = max_layer(xt, dim=-1, block_rows=block_rows)
        return jnp.moveaxis(out, -1, ax)

    orig_shape = x.shape
    w = orig_shape[-1]
    rows = 1
    for s in orig_shape[:-1]:
        rows *= s

    x2 = x.reshape(rows, w)                        # contiguous reshape: no HBM copy
    out2 = _max_lastdim_2d(x2, block_rows=block_rows)
    return out2.reshape(orig_shape[:-1] + (1,))


if __name__ == "__main__":
    key = jax.random.PRNGKey(0)
    k1, k2 = jax.random.split(key)

    # FBCNet-style NCHW input (batch, bands, channels, time): single-block path.
    x = jax.random.normal(k1, (2, 4, 16, 16), dtype=jnp.float32)
    out = jax.block_until_ready(max_layer(x, dim=-1))
    ref = jnp.max(x, axis=-1, keepdims=True)
    assert out.shape == (2, 4, 16, 1), out.shape
    assert jnp.allclose(out, ref), "mismatch vs reference (dim=-1, single block)"

    # Multi-block path with a partial final tile (rows=180, not divisible by 16).
    y = jax.random.normal(k2, (2, 9, 10, 200), dtype=jnp.float32)
    out_y = jax.block_until_ready(max_layer(y, dim=-1, block_rows=16))
    assert jnp.allclose(out_y, jnp.max(y, axis=-1, keepdims=True)), \
        "mismatch vs reference (multi-block / partial tile)"

    # General-dim path (moveaxis wrapper), matching torch.max(dim=1, keepdim=True).
    out_d1 = jax.block_until_ready(max_layer(x, dim=1))
    assert out_d1.shape == (2, 1, 16, 16), out_d1.shape
    assert jnp.allclose(out_d1, jnp.max(x, axis=1, keepdims=True)), \
        "mismatch vs reference (dim=1)"

    print("KERNEL_OK")
</pallas_src>

<mosaic_0001>
module attributes {stable_mosaic.version = 11 : i64} {
  func.func @_max_last_kernel(%arg0: i32, %arg1: memref<128x16xf32, #tpu.memory_space<vmem>>, %arg2: memref<128x1xf32, #tpu.memory_space<vmem>>) attributes {dimension_semantics = [#tpu.dimension_semantics<parallel>], iteration_bounds = array<i64: 1>, scalar_prefetch = 0 : i64, scratch_operands = 0 : i64, tpu.core_type = #tpu.core_type<tc>, window_params = [{transform_indices = @transform_0, window_bounds = array<i64: 128, 16>}, {transform_indices = @transform_1, window_bounds = array<i64: 128, 1>}]} {
    %c0 = arith.constant 0 : index
    %c0_0 = arith.constant 0 : index
    %0 = vector.load %arg1[%c0, %c0_0] : memref<128x16xf32, #tpu.memory_space<vmem>>, vector<128x16xf32>
    %cst = arith.constant dense<0xFF800000> : vector<128xf32>
    %1 = vector.multi_reduction <maximumf>, %0, %cst [1] : vector<128x16xf32> to vector<128xf32>
    %2 = vector.shape_cast %1 : vector<128xf32> to vector<128x1xf32>
    %c0_1 = arith.constant 0 : index
    %c0_2 = arith.constant 0 : index
    %3 = vector.load %arg2[%c0_1, %c0_2] : memref<128x1xf32, #tpu.memory_space<vmem>>, vector<128x1xf32>
    tpu.vector_store %arg2[%c0_1, %c0_2], %2 {strides = array<i32>} : memref<128x1xf32, #tpu.memory_space<vmem>>, vector<128x1xf32>,
    return
  }
  func.func @transform_0(%arg0: i32) -> (i32, i32) {
    %c0_i32 = arith.constant 0 : i32
    %c0_i32_0 = arith.constant 0 : i32
    return %arg0, %c0_i32 : i32, i32
  }
  func.func @transform_1(%arg0: i32) -> (i32, i32) {
    %c0_i32 = arith.constant 0 : i32
    %c0_i32_0 = arith.constant 0 : i32
    return %arg0, %c0_i32 : i32, i32
  }
}

</mosaic_0001>

<llo_original>
// kernel: tpu_custom_call.1
$region0: #{tpu_custom_call.1}
  #allocation0 [shape = 'u32[]', space=smem, size = 0x4, offset = 0x4, fixed_abs, tag = 'smem constant byte address 0x4 - core index']
  #allocation1 [shape = 'u32[144,128]{1,0:T(1,128)}', space=vmem, size = 0x12000, scoped, tag = 'internal scratch']
  %s0 = inlined_call_operand.vmem [shape: f32[128,16], index: 0, kind: input, shape index: {}]
  %s1 = inlined_call_operand.vmem [shape: f32[128,1], index: 1, kind: output, shape index: {}]
  %s2 = sld [smem:[#allocation0]]
  $region14: #{tpu_custom_call.1} parent=0
    _
  %s4 = ssub.s32 1, %s2
  %s5 = scalar_select 0, %s4, %s2
  // Predicated region
  $region2: #{tpu_custom_call.1} parent=0 // pred_check
    _
  $region3: #{tpu_custom_call.1} parent=0 // pred_check_branch
    %7 = sbr.rel (0) target = $region5
  $region4: #{tpu_custom_call.1} parent=0 // pred_region
    _
  $region5: #{tpu_custom_call.1} parent=0 // pred_fallthru
    _
  %v8 = vld [vmem:[%s0] sm:$0xff]
  %v9 = vld [vmem:[%s0 + $0x8] sm:$0xff]
  %v10 = vld [vmem:[%s0 + $0x10] sm:$0xff]
  %v11 = vld [vmem:[%s0 + $0x18] sm:$0xff]
  %v12 = vld [vmem:[%s0 + $0x20] sm:$0xff]
  %v13 = vld [vmem:[%s0 + $0x28] sm:$0xff]
  %v14 = vld [vmem:[%s0 + $0x30] sm:$0xff]
  %v15 = vld [vmem:[%s0 + $0x38] sm:$0xff]
  %v16 = vld [vmem:[%s0 + $0x40] sm:$0xff]
  %v17 = vld [vmem:[%s0 + $0x48] sm:$0xff]
  %v18 = vld [vmem:[%s0 + $0x50] sm:$0xff]
  %v19 = vld [vmem:[%s0 + $0x58] sm:$0xff]
  %v20 = vld [vmem:[%s0 + $0x60] sm:$0xff]
  %v21 = vld [vmem:[%s0 + $0x68] sm:$0xff]
  %v22 = vld [vmem:[%s0 + $0x70] sm:$0xff]
  %v23 = vld [vmem:[%s0 + $0x78] sm:$0xff]
  %vm24 = vcmask 130048
  %v25 = vsel %vm24, %v8, -inf
  %26 = vmax.xlane.f32.xlu0 %v25
  %v27 = vpop.xlane.xlu0 %26
  %v28 = vsel %vm24, %v9, -inf
  %29 = vmax.xlane.f32.xlu0 %v28
  %v30 = vpop.xlane.xlu0 %29
  %v31 = vsel %vm24, %v10, -inf
  %32 = vmax.xlane.f32.xlu0 %v31
  %v33 = vpop.xlane.xlu0 %32
  %v34 = vsel %vm24, %v11, -inf
  %35 = vmax.xlane.f32.xlu0 %v34
  %v36 = vpop.xlane.xlu0 %35
  %v37 = vsel %vm24, %v12, -inf
  %38 = vmax.xlane.f32.xlu0 %v37
  %v39 = vpop.xlane.xlu0 %38
  %v40 = vsel %vm24, %v13, -inf
  %41 = vmax.xlane.f32.xlu0 %v40
  %v42 = vpop.xlane.xlu0 %41
  %v43 = vsel %vm24, %v14, -inf
  %44 = vmax.xlane.f32.xlu0 %v43
  %v45 = vpop.xlane.xlu0 %44
  %v46 = vsel %vm24, %v15, -inf
  %47 = vmax.xlane.f32.xlu0 %v46
  %v48 = vpop.xlane.xlu0 %47
  %v49 = vsel %vm24, %v16, -inf
  %50 = vmax.xlane.f32.xlu0 %v49
  %v51 = vpop.xlane.xlu0 %50
  %v52 = vsel %vm24, %v17, -inf
  %53 = vmax.xlane.f32.xlu0 %v52
  %v54 = vpop.xlane.xlu0 %53
  %v55 = vsel %vm24, %v18, -inf
  %56 = vmax.xlane.f32.xlu0 %v55
  %v57 = vpop.xlane.xlu0 %56
  %v58 = vsel %vm24, %v19, -inf
  %59 = vmax.xlane.f32.xlu0 %v58
  %v60 = vpop.xlane.xlu0 %59
  %v61 = vsel %vm24, %v20, -inf
  %62 = vmax.xlane.f32.xlu0 %v61
  %v63 = vpop.xlane.xlu0 %62
  %v64 = vsel %vm24, %v21, -inf
  %65 = vmax.xlane.f32.xlu0 %v64
  %v66 = vpop.xlane.xlu0 %65
  %v67 = vsel %vm24, %v22, -inf
  %68 = vmax.xlane.f32.xlu0 %v67
  %v69 = vpop.xlane.xlu0 %68
  %v70 = vsel %vm24, %v23, -inf
  %71 = vmax.xlane.f32.xlu0 %v70
  %v72 = vpop.xlane.xlu0 %71
  %vm73 = vcmask 7168
  %74 = vst.msk [vmem:[%s1] sm:$0xff] %vm73, %v27
  %75 = vst.msk [vmem:[%s1 + $0x8] sm:$0xff] %vm73, %v30
  %76 = vst.msk [vmem:[%s1 + $0x10] sm:$0xff] %vm73, %v33
  %77 = vst.msk [vmem:[%s1 + $0x18] sm:$0xff] %vm73, %v36
  %78 = vst.msk [vmem:[%s1 + $0x20] sm:$0xff] %vm73, %v39
  %79 = vst.msk [vmem:[%s1 + $0x28] sm:$0xff] %vm73, %v42
  %80 = vst.msk [vmem:[%s1 + $0x30] sm:$0xff] %vm73, %v45
  %81 = vst.msk [vmem:[%s1 + $0x38] sm:$0xff] %vm73, %v48
  %82 = vst.msk [vmem:[%s1 + $0x40] sm:$0xff] %vm73, %v51
  %83 = vst.msk [vmem:[%s1 + $0x48] sm:$0xff] %vm73, %v54
  %84 = vst.msk [vmem:[%s1 + $0x50] sm:$0xff] %vm73, %v57
  %85 = vst.msk [vmem:[%s1 + $0x58] sm:$0xff] %vm73, %v60
  %86 = vst.msk [vmem:[%s1 + $0x60] sm:$0xff] %vm73, %v63
  %87 = vst.msk [vmem:[%s1 + $0x68] sm:$0xff] %vm73, %v66
  %88 = vst.msk [vmem:[%s1 + $0x70] sm:$0xff] %vm73, %v69
  %89 = vst.msk [vmem:[%s1 + $0x78] sm:$0xff] %vm73, %v72
  // Predicated region
  $region6: #{tpu_custom_call.1} parent=0 // pred_check
    _
  $region7: #{tpu_custom_call.1} parent=0 // pred_check_branch
    %91 = sbr.rel (0) target = $region9
  $region8: #{tpu_custom_call.1} parent=0 // pred_region
    _
  $region9: #{tpu_custom_call.1} parent=0 // pred_fallthru
    _
  // Predicated region
  $region10: #{tpu_custom_call.1} parent=0 // pred_check
    _
  $region11: #{tpu_custom_call.1} parent=0 // pred_check_branch
    %93 = sbr.rel (0) target = $region13
  $region12: #{tpu_custom_call.1} parent=0 // pred_region
    _
  $region13: #{tpu_custom_call.1} parent=0 // pred_fallthru
    _

</llo_original>
